<compile_context>
chip_gen: v5e
topology: v5e:2x2
jax: 0.10.0
libtpu: 0.0.40
codegen_flags: <defaults>
</compile_context>

<pallas_src>
import functools

import jax
import jax.numpy as jnp
from jax.experimental import pallas as pl
from jax.experimental.pallas import tpu as pltpu


def _make_fuser_kernel(n_modality):
    def kernel(sm_ref, *refs):
        # sm_ref : (M, TL)  f32 softmaxed weights (modality-major)
        # refs   : n_modality latent refs of (TB, TL), then the output ref (TB, TL)
        x_refs = refs[:n_modality]
        o_ref = refs[n_modality]

        # Unrolled accumulation over the (small, static) modality count.
        acc = x_refs[0][...].astype(jnp.float32) * sm_ref[0, :][None, :]
        for m in range(1, n_modality):
            acc = acc + x_refs[m][...].astype(jnp.float32) * sm_ref[m, :][None, :]

        o_ref[...] = acc.astype(o_ref.dtype)

    return kernel


def _pick_tile(dim, align, cap):
    """Tile that is a multiple of `align` (rounded DOWN), capped at `cap`.
    Dims <= align use the legal full-dim-block exception.  Edge tiles that do
    not divide `dim` are padded/masked by Pallas."""
    if dim <= align:
        return dim
    return min(cap, (dim // align) * align)


# Double-buffered pipelined-tile budget; conservative enough for v5e's 16 MiB
# default scoped VMEM once we raise the limit (see vmem_limit_bytes below),
# and in the 16-24 MiB sweet spot the review recommends for v6e/v7x.
_VMEM_TILE_BUDGET = 20 * 1024 * 1024


def _choose_tiles(batch, l_dim, n_modality, itemsize):
    """Lane-dense TL (mult of 128, up to 2048) and sublane-aligned TB (mult of
    8, up to 512), sized so 2*(M+1)*TB*TL*itemsize <= _VMEM_TILE_BUDGET."""
    tl = _pick_tile(l_dim, 128, 2048)
    denom = 2 * (n_modality + 1) * tl * itemsize
    tb_budget = max(8, (_VMEM_TILE_BUDGET // denom) // 8 * 8)
    tb = _pick_tile(batch, 8, min(512, int(tb_budget)))
    # If even the minimal batch tile overflows (large M / wide dtype), shrink TL.
    while tl > 128 and 2 * (n_modality + 1) * tb * tl * itemsize > _VMEM_TILE_BUDGET:
        tl = max(128, tl // 2)
    return tb, tl


@functools.partial(jax.jit, static_argnames=("tb", "tl"))
def _fuser_call(sm, latents, tb, tl):
    batch, l_dim = latents[0].shape
    n_modality = len(latents)
    lat_itemsize = jnp.dtype(latents[0].dtype).itemsize
    out_dtype = latents[0].dtype

    # l_dim tiles OUTER (j), batch tiles INNER (i): weight block index (0, j)
    # is constant across the inner axis -> resident, not re-DMA'd per step.
    grid = (pl.cdiv(l_dim, tl), pl.cdiv(batch, tb))

    lat_spec = pl.BlockSpec((tb, tl), lambda j, i: (i, j))
    cost = pl.CostEstimate(
        flops=(2 * n_modality - 1) * batch * l_dim,
        transcendentals=0,
        bytes_accessed=(n_modality + 1) * batch * l_dim * lat_itemsize
        + n_modality * l_dim * 4,
    )

    return pl.pallas_call(
        _make_fuser_kernel(n_modality),
        out_shape=jax.ShapeDtypeStruct((batch, l_dim), out_dtype),
        grid_spec=pltpu.PrefetchScalarGridSpec(
            num_scalar_prefetch=0,
            grid=grid,
            in_specs=[
                # Softmaxed weights: depends only on the outer l_dim axis.
                pl.BlockSpec((n_modality, tl), lambda j, i: (0, j)),
            ] + [lat_spec] * n_modality,
            out_specs=pl.BlockSpec((tb, tl), lambda j, i: (i, j)),
        ),
        compiler_params=pltpu.CompilerParams(
            dimension_semantics=("parallel", "parallel"),
            vmem_limit_bytes=32 * 1024 * 1024,
        ),
        cost_estimate=cost,
    )(sm, *latents)


def weighted_mean_feature_fuser(latents, weights, out_dtype=None):
    """latents: list of n_modality arrays of shape (batch, l_dim);
       weights: (l_dim, n_modality) parameter (PyTorch layout).
       out_dtype: defaults to the latents' dtype (bandwidth-optimal).  Pass
       jnp.float32 to match PyTorch's bf16->f32 promotion exactly."""
    n_modality = len(latents)
    batch, l_dim = latents[0].shape
    assert weights.shape == (l_dim, n_modality)
    for x in latents[1:]:
        assert x.shape == latents[0].shape and x.dtype == latents[0].dtype, \
            "all modality latents must share shape and dtype"

    # Softmax of the tiny weight matrix is done once here (f32), not per grid step.
    sm = jax.nn.softmax(weights.astype(jnp.float32), axis=-1)  # (L, M)
    sm = jnp.transpose(sm, (1, 0))                             # (M, L), modality-major

    lats = tuple(latents)
    if out_dtype is not None and out_dtype != latents[0].dtype:
        # TODO(synk): keep the cast inside the kernel instead of re-materializing
        # here if a non-native out_dtype is ever hot; default path avoids it.
        lats = tuple(x.astype(out_dtype) for x in latents)

    itemsize = jnp.dtype(lats[0].dtype).itemsize
    tb, tl = _choose_tiles(batch, l_dim, n_modality, itemsize)
    return _fuser_call(sm, lats, tb, tl)


if __name__ == "__main__":
    key = jax.random.PRNGKey(0)
    n_modality = 3
    batch = 16
    l_dim = 256

    # Deterministic parameter init matching the module's __init__:
    #   torch.full((l_dim, n_modality), 1 / n_modality)
    weights = jnp.full((l_dim, n_modality), 1.0 / n_modality, dtype=jnp.float32)

    keys = jax.random.split(key, n_modality)
    latents = [jax.random.normal(k, (batch, l_dim), dtype=jnp.float32) for k in keys]

    out = weighted_mean_feature_fuser(latents, weights)
    out = jax.block_until_ready(out)

    # Reference check in plain JAX (same math as the PyTorch forward).
    w_sm = jax.nn.softmax(weights, axis=-1)                    # (L, M)
    stacked = jnp.stack(latents, axis=-1)                      # (B, L, M)
    ref = jnp.sum(w_sm[None, :, :] * stacked, axis=-1)         # (B, L)
    assert out.shape == (batch, l_dim)
    assert jnp.allclose(out, ref, atol=1e-5, rtol=1e-5)

    print("KERNEL_OK")
</pallas_src>

<mosaic_0001>
module attributes {stable_mosaic.version = 11 : i64} {
  func.func @kernel(%arg0: i32, %arg1: i32, %arg2: memref<3x256xf32, #tpu.memory_space<vmem>>, %arg3: memref<16x256xf32, #tpu.memory_space<vmem>>, %arg4: memref<16x256xf32, #tpu.memory_space<vmem>>, %arg5: memref<16x256xf32, #tpu.memory_space<vmem>>, %arg6: memref<16x256xf32, #tpu.memory_space<vmem>>) attributes {dimension_semantics = [#tpu.dimension_semantics<parallel>, #tpu.dimension_semantics<parallel>], iteration_bounds = array<i64: 1, 1>, scalar_prefetch = 0 : i64, scratch_operands = 0 : i64, tpu.core_type = #tpu.core_type<tc>, window_params = [{transform_indices = @transform_0, window_bounds = array<i64: 3, 256>}, {transform_indices = @transform_1, window_bounds = array<i64: 16, 256>}, {transform_indices = @transform_2, window_bounds = array<i64: 16, 256>}, {transform_indices = @transform_3, window_bounds = array<i64: 16, 256>}, {transform_indices = @transform_4, window_bounds = array<i64: 16, 256>}]} {
    %c0 = arith.constant 0 : index
    %c0_0 = arith.constant 0 : index
    %0 = vector.load %arg3[%c0, %c0_0] : memref<16x256xf32, #tpu.memory_space<vmem>>, vector<16x256xf32>
    %c0_1 = arith.constant 0 : index
    %c0_2 = arith.constant 0 : index
    %1 = vector.load %arg2[%c0_1, %c0_2] : memref<3x256xf32, #tpu.memory_space<vmem>>, vector<1x256xf32>
    %2 = vector.shape_cast %1 : vector<1x256xf32> to vector<256xf32>
    %3 = vector.shape_cast %2 : vector<256xf32> to vector<1x256xf32>
    %4 = vector.broadcast %3 : vector<1x256xf32> to vector<16x256xf32>
    %5 = arith.mulf %0, %4 : vector<16x256xf32>
    %c0_3 = arith.constant 0 : index
    %c0_4 = arith.constant 0 : index
    %6 = vector.load %arg4[%c0_3, %c0_4] : memref<16x256xf32, #tpu.memory_space<vmem>>, vector<16x256xf32>
    %c1 = arith.constant 1 : index
    %c0_5 = arith.constant 0 : index
    %7 = vector.load %arg2[%c1, %c0_5] : memref<3x256xf32, #tpu.memory_space<vmem>>, vector<1x256xf32>
    %8 = vector.shape_cast %7 : vector<1x256xf32> to vector<256xf32>
    %9 = vector.shape_cast %8 : vector<256xf32> to vector<1x256xf32>
    %10 = vector.broadcast %9 : vector<1x256xf32> to vector<16x256xf32>
    %11 = arith.mulf %6, %10 : vector<16x256xf32>
    %12 = arith.addf %5, %11 : vector<16x256xf32>
    %c0_6 = arith.constant 0 : index
    %c0_7 = arith.constant 0 : index
    %13 = vector.load %arg5[%c0_6, %c0_7] : memref<16x256xf32, #tpu.memory_space<vmem>>, vector<16x256xf32>
    %c2 = arith.constant 2 : index
    %c0_8 = arith.constant 0 : index
    %14 = vector.load %arg2[%c2, %c0_8] : memref<3x256xf32, #tpu.memory_space<vmem>>, vector<1x256xf32>
    %15 = vector.shape_cast %14 : vector<1x256xf32> to vector<256xf32>
    %16 = vector.shape_cast %15 : vector<256xf32> to vector<1x256xf32>
    %17 = vector.broadcast %16 : vector<1x256xf32> to vector<16x256xf32>
    %18 = arith.mulf %13, %17 : vector<16x256xf32>
    %19 = arith.addf %12, %18 : vector<16x256xf32>
    %c0_9 = arith.constant 0 : index
    %c0_10 = arith.constant 0 : index
    %20 = vector.load %arg6[%c0_9, %c0_10] : memref<16x256xf32, #tpu.memory_space<vmem>>, vector<16x256xf32>
    tpu.vector_store %arg6[%c0_9, %c0_10], %19 {strides = array<i32>} : memref<16x256xf32, #tpu.memory_space<vmem>>, vector<16x256xf32>,
    return
  }
  func.func @transform_0(%arg0: i32, %arg1: i32) -> (i32, i32) {
    %c0_i32 = arith.constant 0 : i32
    %c0_i32_0 = arith.constant 0 : i32
    return %c0_i32, %arg0 : i32, i32
  }
  func.func @transform_1(%arg0: i32, %arg1: i32) -> (i32, i32) {
    %c0_i32 = arith.constant 0 : i32
    return %arg1, %arg0 : i32, i32
  }
  func.func @transform_2(%arg0: i32, %arg1: i32) -> (i32, i32) {
    %c0_i32 = arith.constant 0 : i32
    return %arg1, %arg0 : i32, i32
  }
  func.func @transform_3(%arg0: i32, %arg1: i32) -> (i32, i32) {
    %c0_i32 = arith.constant 0 : i32
    return %arg1, %arg0 : i32, i32
  }
  func.func @transform_4(%arg0: i32, %arg1: i32) -> (i32, i32) {
    %c0_i32 = arith.constant 0 : i32
    return %arg1, %arg0 : i32, i32
  }
}

</mosaic_0001>

<llo_original>
// kernel: _fuser_call.1
$region0: #{_fuser_call.1}
  #allocation0 [shape = 'u32[]', space=smem, size = 0x4, offset = 0x4, fixed_abs, tag = 'smem constant byte address 0x4 - core index']
  #allocation1 [shape = 'u32[72,128]{1,0:T(1,128)}', space=vmem, size = 0x9000, scoped, tag = 'internal scratch']
  %s0 = inlined_call_operand.hbm [shape: f32[3,256], index: 0, kind: input, shape index: {}]
  %s1 = inlined_call_operand.hbm [shape: f32[16,256], index: 1, kind: input, shape index: {}]
  %s2 = inlined_call_operand.hbm [shape: f32[16,256], index: 2, kind: input, shape index: {}]
  %s3 = inlined_call_operand.hbm [shape: f32[16,256], index: 3, kind: input, shape index: {}]
  %s4 = inlined_call_operand.hbm [shape: f32[16,256], index: 4, kind: output, shape index: {}]
  %s5 = sld [smem:[#allocation0]]
  $region42: #{_fuser_call.1} parent=0
    _
  %s7 = ssub.s32 1, %s5
  %s8 = scalar_select 0, %s7, %s5
  $region1: #{_fuser_call.1} parent=0
    #allocation2 [shape = 'u8[4096]{0}', space=vmem, size = 0x1000, scoped, tag = 'input window, operand 0, single buffered']
    #allocation3 [shape = 's32[1]{0}', space=sflag, size = 0x4, scoped, tag = 'scoped memory for _fuser_call.1']
    #allocation4 [shape = 's32[1]{0}', space=sflag, size = 0x4, scoped, tag = 'scoped memory for _fuser_call.1']
    #allocation5 [shape = 'u8[16384]{0}', space=vmem, size = 0x4000, scoped, tag = 'input window, operand 1, single buffered']
    #allocation6 [shape = 's32[1]{0}', space=sflag, size = 0x4, scoped, tag = 'scoped memory for _fuser_call.1']
    #allocation7 [shape = 'u8[16384]{0}', space=vmem, size = 0x4000, scoped, tag = 'input window, operand 2, single buffered']
    #allocation8 [shape = 'u8[16384]{0}', space=vmem, size = 0x4000, scoped, tag = 'input window, operand 3, single buffered']
    #allocation9 [shape = 's32[1]{0}', space=sflag, size = 0x4, scoped, tag = 'scoped memory for _fuser_call.1']
    #allocation10 [shape = 'u8[16384]{0}', space=vmem, size = 0x4000, scoped, tag = 'output window, operand 0, single buffered']
    %9 = vsyncpa [#allocation3], 0
    %10 = vsyncpa [#allocation6], 0
    %11 = vsyncpa [#allocation9], 0
    %12 = vsyncpa [#allocation4], 0
    // Predicated region
    $region2: #{_fuser_call.1} parent=1 // pred_check
      _
    $region3: #{_fuser_call.1} parent=1 // pred_check_branch
      %14 = sbr.rel (0) target = $region5
    $region4: #{_fuser_call.1} parent=1 // pred_region
      %16 = vsyncadd [#allocation3], 0
      %s18 = sshll.u32 %s0, 4
      %s19 = int_to_ptr.hbm [resolvable:$true] %s18
      %s20 = sshll.u32 [#allocation2], 4
      %s21 = int_to_ptr.vmem [resolvable:$true] %s20
      %23 = dma.hbm_to_vmem [thread:$0]  %s19, 128, %s21, [#allocation3]
    $region5: #{_fuser_call.1} parent=1 // pred_fallthru
      _
    // Predicated region
    $region6: #{_fuser_call.1} parent=1 // pred_check
      _
    $region7: #{_fuser_call.1} parent=1 // pred_check_branch
      %25 = sbr.rel (0) target = $region9
    $region8: #{_fuser_call.1} parent=1 // pred_region
      %27 = vsyncadd [#allocation6], 0
      %s28 = sshll.u32 %s1, 4
      %s29 = int_to_ptr.hbm [resolvable:$true] %s28
      %s30 = sshll.u32 [#allocation5], 4
      %s31 = int_to_ptr.vmem [resolvable:$true] %s30
      %36 = dma.hbm_to_vmem [thread:$0]  %s29, 512, %s31, [#allocation6], 256, 256, 16
    $region9: #{_fuser_call.1} parent=1 // pred_fallthru
      _
    // Predicated region
    $region10: #{_fuser_call.1} parent=1 // pred_check
      _
    $region11: #{_fuser_call.1} parent=1 // pred_check_branch
      %38 = sbr.rel (0) target = $region13
    $region12: #{_fuser_call.1} parent=1 // pred_region
      %40 = vsyncadd [#allocation6], 0
      %s41 = sshll.u32 %s2, 4
      %s42 = int_to_ptr.hbm [resolvable:$true] %s41
      %s43 = sshll.u32 [#allocation7], 4
      %s44 = int_to_ptr.vmem [resolvable:$true] %s43
      %49 = dma.hbm_to_vmem [thread:$0]  %s42, 512, %s44, [#allocation6], 256, 256, 16
    $region13: #{_fuser_call.1} parent=1 // pred_fallthru
      _
    // Predicated region
    $region14: #{_fuser_call.1} parent=1 // pred_check
      _
    $region15: #{_fuser_call.1} parent=1 // pred_check_branch
      %51 = sbr.rel (0) target = $region17
    $region16: #{_fuser_call.1} parent=1 // pred_region
      %53 = vsyncadd [#allocation9], 0
      %s54 = sshll.u32 %s3, 4
      %s55 = int_to_ptr.hbm [resolvable:$true] %s54
      %s56 = sshll.u32 [#allocation8], 4
      %s57 = int_to_ptr.vmem [resolvable:$true] %s56
      %62 = dma.hbm_to_vmem [thread:$0]  %s55, 512, %s57, [#allocation9], 256, 256, 16
    $region17: #{_fuser_call.1} parent=1 // pred_fallthru
      _
    // Predicated region
    $region18: #{_fuser_call.1} parent=1 // pred_check
      _
    $region19: #{_fuser_call.1} parent=1 // pred_check_branch
      %64 = sbr.rel (0) target = $region21
    $region20: #{_fuser_call.1} parent=1 // pred_region
      %66 = dma.done [#allocation3], 128
    $region21: #{_fuser_call.1} parent=1 // pred_fallthru
      _
    // Predicated region
    $region22: #{_fuser_call.1} parent=1 // pred_check
      _
    $region23: #{_fuser_call.1} parent=1 // pred_check_branch
      %68 = sbr.rel (0) target = $region25
    $region24: #{_fuser_call.1} parent=1 // pred_region
      %70 = dma.done [#allocation6], 512
    $region25: #{_fuser_call.1} parent=1 // pred_fallthru
      _
    // Predicated region
    $region26: #{_fuser_call.1} parent=1 // pred_check
      _
    $region27: #{_fuser_call.1} parent=1 // pred_check_branch
      %72 = sbr.rel (0) target = $region29
    $region28: #{_fuser_call.1} parent=1 // pred_region
      %74 = dma.done [#allocation6], 512
    $region29: #{_fuser_call.1} parent=1 // pred_fallthru
      _
    // Predicated region
    $region30: #{_fuser_call.1} parent=1 // pred_check
      _
    $region31: #{_fuser_call.1} parent=1 // pred_check_branch
      %76 = sbr.rel (0) target = $region33
    $region32: #{_fuser_call.1} parent=1 // pred_region
      %78 = dma.done [#allocation9], 512
    $region33: #{_fuser_call.1} parent=1 // pred_fallthru
      _
    %v79 = vld [vmem:[#allocation5] sm:$0xff]
    %v80 = vld [vmem:[#allocation5 + $0x8] sm:$0xff]
    %v81 = vld [vmem:[#allocation5 + $0x10] sm:$0xff]
    %v82 = vld [vmem:[#allocation5 + $0x18] sm:$0xff]
    %v83 = vld [vmem:[#allocation2] ss:$4 sm:$0x3]
    %v85 = vperm.slane %v83, 0
    %v86 = vperm.slane %v83, 1
    %v89 = vmul.f32 %v79, %v85
    %v90 = vmul.f32 %v80, %v86
    %v91 = vmul.f32 %v81, %v85
    %v92 = vmul.f32 %v82, %v86
    %v93 = vld [vmem:[#allocation7] sm:$0xff]
    %v94 = vld [vmem:[#allocation7 + $0x8] sm:$0xff]
    %v95 = vld [vmem:[#allocation7 + $0x10] sm:$0xff]
    %v96 = vld [vmem:[#allocation7 + $0x18] sm:$0xff]
    %s97 = scalar_lea.vmem [#allocation2], 1
    %v98 = vld [vmem:[%s97] ss:$4 sm:$0x3]
    %v100 = vperm.slane %v98, 0
    %v101 = vperm.slane %v98, 1
    %v104 = vmul.f32 %v93, %v100
    %v105 = vmul.f32 %v94, %v101
    %v106 = vmul.f32 %v95, %v100
    %v107 = vmul.f32 %v96, %v101
    %v108 = vadd.f32 %v89, %v104
    %v109 = vadd.f32 %v90, %v105
    %v110 = vadd.f32 %v91, %v106
    %v111 = vadd.f32 %v92, %v107
    %v112 = vld [vmem:[#allocation8] sm:$0xff]
    %v113 = vld [vmem:[#allocation8 + $0x8] sm:$0xff]
    %v114 = vld [vmem:[#allocation8 + $0x10] sm:$0xff]
    %v115 = vld [vmem:[#allocation8 + $0x18] sm:$0xff]
    %s116 = scalar_lea.vmem [#allocation2], 2
    %v117 = vld [vmem:[%s116] ss:$4 sm:$0x3]
    %v119 = vperm.slane %v117, 0
    %v120 = vperm.slane %v117, 1
    %v123 = vmul.f32 %v112, %v119
    %v124 = vmul.f32 %v113, %v120
    %v125 = vmul.f32 %v114, %v119
    %v126 = vmul.f32 %v115, %v120
    %v127 = vadd.f32 %v108, %v123
    %v128 = vadd.f32 %v109, %v124
    %v129 = vadd.f32 %v110, %v125
    %v130 = vadd.f32 %v111, %v126
    %131 = vst [vmem:[#allocation10] sm:$0xff] %v127
    %132 = vst [vmem:[#allocation10 + $0x8] sm:$0xff] %v128
    %133 = vst [vmem:[#allocation10 + $0x10] sm:$0xff] %v129
    %134 = vst [vmem:[#allocation10 + $0x18] sm:$0xff] %v130
    // Predicated region
    $region34: #{_fuser_call.1} parent=1 // pred_check
      _
    $region35: #{_fuser_call.1} parent=1 // pred_check_branch
      %136 = sbr.rel (0) target = $region37
    $region36: #{_fuser_call.1} parent=1 // pred_region
      %138 = vsyncadd [#allocation4], 0
      %s139 = sshll.u32 [#allocation10], 4
      %s140 = int_to_ptr.vmem [resolvable:$true] %s139
      %s141 = sshll.u32 %s4, 4
      %s142 = int_to_ptr.hbm [resolvable:$true] %s141
      %147 = dma.vmem_to_hbm [thread:$0]  %s140, 512, %s142, [#allocation4], 256, 256, 16
    $region37: #{_fuser_call.1} parent=1 // pred_fallthru
      _
    // Predicated region
    $region38: #{_fuser_call.1} parent=1 // pred_check
      _
    $region39: #{_fuser_call.1} parent=1 // pred_check_branch
      %149 = sbr.rel (0) target = $region41
    $region40: #{_fuser_call.1} parent=1 // pred_region
      %151 = dma.done [#allocation4], 512
    $region41: #{_fuser_call.1} parent=1 // pred_fallthru
      _
    %152 = vsyncpa [#allocation3], 1
    %153 = vsyncpa [#allocation6], 1
    %154 = vsyncpa [#allocation9], 1
    %155 = vsyncpa [#allocation4], 1

</llo_original>
